<compile_context>
chip_gen: v6e
topology: v6e:2x2x1
jax: 0.10.0
libtpu: 0.0.40
codegen_flags: <defaults>
</compile_context>

<pallas_src>
import jax
import jax.numpy as jnp
from jax.experimental import pallas as pl
from jax.experimental.pallas import tpu as pltpu


def critic_kernel(x_ref, w1_ref, b1_ref, w2row_ref, b2_ref, o_ref):
    """One batch tile: o[1,1,tile_b] = relu(x @ w1 + b1) @ w2 + b2, lane-dense row."""
    # Layer 1: [tile_b, in] @ [in, hidden] on the MXU, f32 accumulation regardless
    # of the streamed dtype (f32 or bf16 supplied upstream).
    h = jnp.dot(x_ref[...], w1_ref[...], preferred_element_type=jnp.float32)
    h = jnp.maximum(h + b1_ref[...].astype(jnp.float32), 0.0)      # bias + ReLU (VPU)

    # Layer 2 (hidden -> 1): VPU multiply + lane reduce.  Deliberately NOT an
    # N=1 MXU matmul (that would use 1/256 of the MXU columns and add a second
    # MXU push/pop per tile).
    w2_row = w2row_ref[...].astype(jnp.float32)                    # [1, hidden]
    col = jnp.sum(h * w2_row, axis=-1, keepdims=True)              # [tile_b, 1]
    col = col + b2_ref[0, 0]                                       # scalar bias (SMEM)

    # Lane-dense store: one small XLU transpose of the reduced column into a
    # [1, tile_b] row so the output block is written with full-lane stores
    # instead of ~tile_b/8 single-lane masked stores.
    o_ref[...] = col.T.reshape(o_ref.shape)


def _auto_tile_b(in_f, hidden, x_itemsize):
    # Size the batch tile by BYTES, not rows: per-row VMEM footprint is the
    # double-buffered x tile plus the f32 [tile_b, hidden] temporaries (h, h*w2)
    # plus the (tiny) double-buffered output row.
    bytes_per_row = 2 * in_f * x_itemsize + 2 * hidden * 4 + 2 * 4
    budget = 8 * 1024 * 1024                       # ~8 MiB pipelined working set
    tile_b = budget // max(1, bytes_per_row)
    return int(max(1024, min(tile_b, 65536)))


def critic_forward(x, w1, b1, w2, b2, *, tile_b=None, x_buffers=2):
    """Critic forward pass.

    x  : [B, input_size]        (f32, or bf16 if produced upstream — no wrapper cast)
    w1 : [input_size, hidden]   (transposed vs. nn.Linear's [out, in])
    b1 : [hidden] or [1, hidden]
    w2 : [hidden, 1]
    b2 : scalar / [1] / [1, 1]
    returns [B, 1] float32
    """
    B, in_f = x.shape
    hidden = w1.shape[1]
    assert w2.shape == (hidden, 1), "Critic output size must be 1"

    if tile_b is None:
        tile_b = _auto_tile_b(in_f, hidden, x.dtype.itemsize)
        # Keep >= 4 grid steps on large batches so v7x's two TensorCores each get
        # >= 2 pipelined steps (don't collapse the grid to 1 needlessly), without
        # shrinking tiles back into the per-step-overhead-bound regime.
        quarter = pl.cdiv(B, 4)
        if quarter >= 2048:
            tile_b = min(tile_b, quarter)

    if tile_b >= B:
        tile_b, grid_b = B, 1                        # single full-array tile (any B)
    else:
        tile_b = max(8, (tile_b // 8) * 8)           # (8,128) sublane rule for blocked x/out
        grid_b = pl.cdiv(B, tile_b)                  # ragged last tile handled by Pallas padding

    # Small parameters: fixed layouts, kept f32 (negligible HBM traffic).
    w1 = jnp.asarray(w1)
    b1 = jnp.asarray(b1, jnp.float32).reshape(1, hidden)
    w2_row = jnp.asarray(w2, jnp.float32).reshape(1, hidden)
    b2 = jnp.asarray(b2, jnp.float32).reshape(1, 1)

    # Explicit VMEM budget: estimated need with headroom, capped well below v7x's
    # 64 MiB physical capacity (v5e's default scoped limit is only 16 MiB).
    est = (x_buffers * tile_b * in_f * x.dtype.itemsize   # pipelined x tiles
           + 2 * tile_b * hidden * 4                      # h / h*w2 f32 temporaries
           + 2 * tile_b * 4                               # double-buffered out row
           + w1.size * w1.dtype.itemsize + 4 * (2 * hidden + 8))
    vmem_limit = int(min(48 * 1024 * 1024, max(32 * 1024 * 1024, 2 * est)))

    # x stream: deeper buffering is only worth it when per-step tiles are small;
    # default stays at the standard double buffer.
    if x_buffers == 2:
        x_spec = pl.BlockSpec((tile_b, in_f), lambda i: (i, 0))
    else:
        x_spec = pl.BlockSpec((tile_b, in_f), lambda i: (i, 0),
                              pipeline_mode=pl.Buffered(x_buffers))

    out = pl.pallas_call(
        critic_kernel,
        out_shape=jax.ShapeDtypeStruct((grid_b, 1, tile_b), jnp.float32),
        grid=(grid_b,),
        in_specs=[
            x_spec,                                           # streamed batch tiles
            pl.BlockSpec(w1.shape, lambda i: (0, 0)),         # VMEM-resident weights
            pl.BlockSpec(b1.shape, lambda i: (0, 0)),
            pl.BlockSpec(w2_row.shape, lambda i: (0, 0)),
            pl.BlockSpec(memory_space=pltpu.MemorySpace.SMEM),  # scalar b2 in SMEM
        ],
        out_specs=pl.BlockSpec((1, 1, tile_b), lambda i: (i, 0, 0)),
        compiler_params=pltpu.CompilerParams(
            dimension_semantics=("parallel",),                # megacore sharding on v7x
            vmem_limit_bytes=vmem_limit,
        ),
    )(x, w1, b1, w2_row, b2)

    # Cheap wrapper-side layout plumbing on the (small) output only.
    return out.reshape(grid_b * tile_b)[:B].reshape(B, 1)


if __name__ == "__main__":
    batch, input_size, hidden_size, output_size = 8, 32, 32, 1

    key = jax.random.PRNGKey(0)
    kx, k1, k2, k3, k4 = jax.random.split(key, 5)

    x = jax.random.normal(kx, (batch, input_size), dtype=jnp.float32)

    lim1 = 1.0 / jnp.sqrt(input_size)
    w1 = jax.random.uniform(k1, (input_size, hidden_size), jnp.float32, -lim1, lim1)
    b1 = jax.random.uniform(k2, (1, hidden_size), jnp.float32, -lim1, lim1)
    lim2 = 1.0 / jnp.sqrt(hidden_size)
    w2 = jax.random.uniform(k3, (hidden_size, output_size), jnp.float32, -lim2, lim2)
    b2 = jax.random.uniform(k4, (1, output_size), jnp.float32, -lim2, lim2)

    def ref_fn(xx):
        return jnp.maximum(xx.astype(jnp.float32) @ w1 + b1, 0.0) @ w2 + b2

    # 1) small batch, single full-array tile.
    out = jax.block_until_ready(critic_forward(x, w1, b1, w2, b2))
    assert out.shape == (batch, output_size)
    assert jnp.allclose(out, ref_fn(x), atol=1e-5, rtol=1e-5)

    # 2) ragged multi-tile batch: pipelined tiles, partial last tile, lane-dense out.
    x_big = jax.random.normal(jax.random.PRNGKey(1), (300, input_size), jnp.float32)
    out_big = jax.block_until_ready(critic_forward(x_big, w1, b1, w2, b2, tile_b=128))
    assert out_big.shape == (300, output_size)
    assert jnp.allclose(out_big, ref_fn(x_big), atol=1e-5, rtol=1e-5)

    # 3) end-to-end bf16 x/w1 (as if produced upstream in bf16 — no wrapper cast
    #    inside critic_forward); accumulation stays f32 in-kernel.
    out_bf16 = jax.block_until_ready(
        critic_forward(x_big.astype(jnp.bfloat16), w1.astype(jnp.bfloat16),
                       b1, w2, b2, tile_b=128))
    assert jnp.allclose(out_bf16, ref_fn(x_big.astype(jnp.bfloat16)),
                        atol=2e-2, rtol=2e-2)

    print("KERNEL_OK")
</pallas_src>

<mosaic_0001>
module attributes {stable_mosaic.version = 11 : i64} {
  func.func @critic_kernel(%arg0: i32, %arg1: memref<8x32xf32, #tpu.memory_space<vmem>>, %arg2: memref<32x32xf32, #tpu.memory_space<vmem>>, %arg3: memref<1x32xf32, #tpu.memory_space<vmem>>, %arg4: memref<1x32xf32, #tpu.memory_space<vmem>>, %arg5: memref<1x1xf32, #tpu.memory_space<smem>>, %arg6: memref<1x1x8xf32, #tpu.memory_space<vmem>>) attributes {dimension_semantics = [#tpu.dimension_semantics<parallel>], iteration_bounds = array<i64: 1>, scalar_prefetch = 0 : i64, scratch_operands = 0 : i64, tpu.core_type = #tpu.core_type<tc>, window_params = [{transform_indices = @transform_0, window_bounds = array<i64: 8, 32>}, {pipeline_mode = #tpu.pipeline_mode<synchronous>, transform_indices = @transform_1, window_bounds = array<i64: 32, 32>}, {pipeline_mode = #tpu.pipeline_mode<synchronous>, transform_indices = @transform_2, window_bounds = array<i64: 1, 32>}, {pipeline_mode = #tpu.pipeline_mode<synchronous>, transform_indices = @transform_3, window_bounds = array<i64: 1, 32>}, {transform_indices = @transform_4, window_bounds = array<i64: 1, 1>}, {transform_indices = @transform_5, window_bounds = array<i64: 1, 1, 8>}]} {
    %c0 = arith.constant 0 : index
    %c0_0 = arith.constant 0 : index
    %0 = vector.load %arg1[%c0, %c0_0] : memref<8x32xf32, #tpu.memory_space<vmem>>, vector<8x32xf32>
    %c0_1 = arith.constant 0 : index
    %c0_2 = arith.constant 0 : index
    %1 = vector.load %arg2[%c0_1, %c0_2] : memref<32x32xf32, #tpu.memory_space<vmem>>, vector<32x32xf32>
    %cst = arith.constant dense<0.000000e+00> : vector<8x32xf32>
    %2 = tpu.matmul %0, %1, %cst {dimension_numbers = #tpu.dot_dimension_numbers<[1], [0], [0], [1], [0, 0, 1, 1], [], []>} : vector<8x32xf32>, vector<32x32xf32>, vector<8x32xf32> -> vector<8x32xf32>
    %c0_3 = arith.constant 0 : index
    %c0_4 = arith.constant 0 : index
    %3 = vector.load %arg3[%c0_3, %c0_4] : memref<1x32xf32, #tpu.memory_space<vmem>>, vector<1x32xf32>
    %4 = vector.broadcast %3 : vector<1x32xf32> to vector<8x32xf32>
    %5 = arith.addf %2, %4 : vector<8x32xf32>
    %cst_5 = arith.constant 0.000000e+00 : f32
    %6 = vector.broadcast %cst_5 : f32 to vector<8x32xf32>
    %7 = arith.maximumf %5, %6 : vector<8x32xf32>
    %c0_6 = arith.constant 0 : index
    %c0_7 = arith.constant 0 : index
    %8 = vector.load %arg4[%c0_6, %c0_7] : memref<1x32xf32, #tpu.memory_space<vmem>>, vector<1x32xf32>
    %9 = vector.broadcast %8 : vector<1x32xf32> to vector<8x32xf32>
    %10 = arith.mulf %7, %9 : vector<8x32xf32>
    %cst_8 = arith.constant dense<0.000000e+00> : vector<8xf32>
    %11 = vector.multi_reduction <add>, %10, %cst_8 [1] : vector<8x32xf32> to vector<8xf32>
    %12 = vector.shape_cast %11 : vector<8xf32> to vector<8x1xf32>
    %c0_9 = arith.constant 0 : index
    %c0_10 = arith.constant 0 : index
    %13 = memref.load %arg5[%c0_9, %c0_10] : memref<1x1xf32, #tpu.memory_space<smem>>
    %14 = vector.broadcast %13 : f32 to vector<8x1xf32>
    %15 = arith.addf %12, %14 : vector<8x1xf32>
    %16 = tpu.transpose %15, [1, 0] : vector<8x1xf32> -> vector<1x8xf32>
    %17 = vector.shape_cast %16 : vector<1x8xf32> to vector<1x1x8xf32>
    %c0_11 = arith.constant 0 : index
    %c0_12 = arith.constant 0 : index
    %c0_13 = arith.constant 0 : index
    %18 = vector.load %arg6[%c0_11, %c0_12, %c0_13] : memref<1x1x8xf32, #tpu.memory_space<vmem>>, vector<1x1x8xf32>
    tpu.vector_store %arg6[%c0_11, %c0_12, %c0_13], %17 {strides = array<i32>} : memref<1x1x8xf32, #tpu.memory_space<vmem>>, vector<1x1x8xf32>,
    return
  }
  func.func @transform_0(%arg0: i32) -> (i32, i32) {
    %c0_i32 = arith.constant 0 : i32
    %c0_i32_0 = arith.constant 0 : i32
    return %arg0, %c0_i32 : i32, i32
  }
  func.func @transform_1(%arg0: i32) -> (i32, i32) {
    %c0_i32 = arith.constant 0 : i32
    %c0_i32_0 = arith.constant 0 : i32
    %c0_i32_1 = arith.constant 0 : i32
    return %c0_i32, %c0_i32_0 : i32, i32
  }
  func.func @transform_2(%arg0: i32) -> (i32, i32) {
    %c0_i32 = arith.constant 0 : i32
    %c0_i32_0 = arith.constant 0 : i32
    %c0_i32_1 = arith.constant 0 : i32
    return %c0_i32, %c0_i32_0 : i32, i32
  }
  func.func @transform_3(%arg0: i32) -> (i32, i32) {
    %c0_i32 = arith.constant 0 : i32
    %c0_i32_0 = arith.constant 0 : i32
    %c0_i32_1 = arith.constant 0 : i32
    return %c0_i32, %c0_i32_0 : i32, i32
  }
  func.func @transform_4(%arg0: i32) -> (i32, i32) {
    %c0_i32 = arith.constant 0 : i32
    %c0_i32_0 = arith.constant 0 : i32
    %c0_i32_1 = arith.constant 0 : i32
    return %c0_i32, %c0_i32_0 : i32, i32
  }
  func.func @transform_5(%arg0: i32) -> (i32, i32, i32) {
    %c0_i32 = arith.constant 0 : i32
    %c0_i32_0 = arith.constant 0 : i32
    %c0_i32_1 = arith.constant 0 : i32
    return %arg0, %c0_i32, %c0_i32_0 : i32, i32, i32
  }
}

</mosaic_0001>

<llo_original>
// kernel: tpu_custom_call.1
$region0: #{tpu_custom_call.1}
  #allocation0 [shape = 'u32[]', space=smem, size = 0x4, offset = 0x4, fixed_abs, tag = 'smem constant byte address 0x4 - core index']
  #allocation1 [shape = 'u32[144,128]{1,0:T(1,128)}', space=vmem, size = 0x12000, scoped, tag = 'internal scratch']
  #allocation2 [shape = 'f32[1,1]{1,0:T(1,128)S(6)}', space=smem, size = 0x200, scoped, tag = 'scoped memory for tpu_custom_call.1']
  %s0 = inlined_call_operand.hbm [shape: f32[8,32], index: 0, kind: input, shape index: {}]
  %s1 = inlined_call_operand.hbm [shape: f32[32,32], index: 1, kind: input, shape index: {}]
  %s2 = inlined_call_operand.vmem [shape: f32[1,32], index: 2, kind: input, shape index: {}]
  %s3 = inlined_call_operand.vmem [shape: f32[1,32], index: 3, kind: input, shape index: {}]
  %s4 = inlined_call_operand.<no memory space> [shape: f32[1,1], index: 4, kind: input, shape index: {}]
  %s5 = inlined_call_operand.hbm [shape: f32[1,1,8], index: 5, kind: output, shape index: {}]
  %s6 = sld [smem:[#allocation0]]
  $region38: #{tpu_custom_call.1} parent=0
    _
  %s8 = ssub.s32 1, %s6
  %s9 = scalar_select 0, %s8, %s6
  %10 = sst [smem:[#allocation2]] %s4
  $region1: #{tpu_custom_call.1} parent=0
    #allocation3 [shape = 'u8[4096]{0}', space=vmem, size = 0x1000, scoped, tag = 'input window, operand 0, single buffered']
    #allocation4 [shape = 's32[1]{0}', space=sflag, size = 0x4, scoped, tag = 'scoped memory for tpu_custom_call.1']
    #allocation5 [shape = 's32[1]{0}', space=sflag, size = 0x4, scoped, tag = 'scoped memory for tpu_custom_call.1']
    #allocation6 [shape = 'u8[16384]{0}', space=vmem, size = 0x4000, scoped, tag = 'input window, operand 1, single buffered']
    #allocation7 [shape = 's32[1]{0}', space=sflag, size = 0x4, scoped, tag = 'scoped memory for tpu_custom_call.1']
    #allocation8 [shape = 'u8[512]{0}', space=vmem, size = 0x400, scoped, tag = 'output window, operand 0, single buffered']
    %11 = vsyncpa [#allocation4], 0
    %12 = vsyncpa [#allocation7], 0
    %13 = vsyncpa [#allocation5], 0
    // Predicated region
    $region2: #{tpu_custom_call.1} parent=1 // pred_check
      _
    $region3: #{tpu_custom_call.1} parent=1 // pred_check_branch
      %15 = sbr.rel (0) target = $region5
    $region4: #{tpu_custom_call.1} parent=1 // pred_region
      %s17 = ssub.s32 128, 128
      %18 = vsyncadd [#allocation4], %s17
      %s20 = sshll.u32 [#allocation3], 4
      %s21 = int_to_ptr.vmem [resolvable:$true] %s20
      %23 = dma.hbm_to_vmem [thread:$0]  %s0, 128, %s21, [#allocation4]
    $region5: #{tpu_custom_call.1} parent=1 // pred_fallthru
      _
    // Predicated region
    $region6: #{tpu_custom_call.1} parent=1 // pred_check
      _
    $region7: #{tpu_custom_call.1} parent=1 // pred_check_branch
      %25 = sbr.rel (0) target = $region9
    $region8: #{tpu_custom_call.1} parent=1 // pred_region
      %s27 = ssub.s32 512, 512
      %28 = vsyncadd [#allocation7], %s27
      %s29 = sshll.u32 [#allocation6], 4
      %s30 = int_to_ptr.vmem [resolvable:$true] %s29
      %35 = dma.hbm_to_vmem [thread:$0]  %s1, 512, %s30, [#allocation7], 128, 128, 8
    $region9: #{tpu_custom_call.1} parent=1 // pred_fallthru
      _
    // Predicated region
    $region10: #{tpu_custom_call.1} parent=1 // pred_check
      _
    $region11: #{tpu_custom_call.1} parent=1 // pred_check_branch
      %37 = sbr.rel (0) target = $region13
    $region12: #{tpu_custom_call.1} parent=1 // pred_region
      _
    $region13: #{tpu_custom_call.1} parent=1 // pred_fallthru
      _
    // Predicated region
    $region14: #{tpu_custom_call.1} parent=1 // pred_check
      _
    $region15: #{tpu_custom_call.1} parent=1 // pred_check_branch
      %39 = sbr.rel (0) target = $region17
    $region16: #{tpu_custom_call.1} parent=1 // pred_region
      _
    $region17: #{tpu_custom_call.1} parent=1 // pred_fallthru
      _
    // Predicated region
    $region18: #{tpu_custom_call.1} parent=1 // pred_check
      _
    $region19: #{tpu_custom_call.1} parent=1 // pred_check_branch
      %41 = sbr.rel (0) target = $region21
    $region20: #{tpu_custom_call.1} parent=1 // pred_region
      _
    $region21: #{tpu_custom_call.1} parent=1 // pred_fallthru
      _
    // Predicated region
    $region22: #{tpu_custom_call.1} parent=1 // pred_check
      _
    $region23: #{tpu_custom_call.1} parent=1 // pred_check_branch
      %43 = sbr.rel (0) target = $region25
    $region24: #{tpu_custom_call.1} parent=1 // pred_region
      %44 = dma.done [#allocation4], 128
    $region25: #{tpu_custom_call.1} parent=1 // pred_fallthru
      _
    // Predicated region
    $region26: #{tpu_custom_call.1} parent=1 // pred_check
      _
    $region27: #{tpu_custom_call.1} parent=1 // pred_check_branch
      %46 = sbr.rel (0) target = $region29
    $region28: #{tpu_custom_call.1} parent=1 // pred_region
      %47 = dma.done [#allocation7], 512
    $region29: #{tpu_custom_call.1} parent=1 // pred_fallthru
      _
    %v48 = vld [vmem:[#allocation3] sm:$0xff]
    %v49 = vld [vmem:[#allocation6] sm:$0xff]
    %v50 = vld [vmem:[#allocation6 + $0x8] sm:$0xff]
    %v51 = vld [vmem:[#allocation6 + $0x10] sm:$0xff]
    %v52 = vld [vmem:[#allocation6 + $0x18] sm:$0xff]
    %v53 = vld [vmem:[%s2] sm:$0x1]
    %v55 = vlaneseq
    %v56 = vshrl.u32 %v55, 7
    %v57 = vsub.s32 0, %v56
    %v58 = vrot.slane %v53, %v57
    %vm60 = vcmask 261120
    %v62 = vsel %vm60, %v48, 0
    %64 = vmatprep.subr.mxu0 0.0
    %65 = vmatpush1.msra.mxu0 0.0
    %66 = vmatprep.subr.mxu0 0.0
    %67 = vmatpush1.msra.mxu0 0.0
    %68 = vmatprep.subr.mxu0 0.0
    %69 = vmatpush1.msra.mxu0 0.0
    %70 = vmatprep.subr.mxu0 0.0
    %71 = vmatpush1.msra.mxu0 0.0
    %72 = vmatprep.subr.mxu0 0.0
    %73 = vmatpush1.msra.mxu0 0.0
    %74 = vmatprep.subr.mxu0 0.0
    %75 = vmatpush1.msra.mxu0 0.0
    %76 = vmatprep.subr.mxu0 0.0
    %77 = vmatpush1.msra.mxu0 0.0
    %78 = vmatprep.subr.mxu0 0.0
    %79 = vmatpush1.msra.mxu0 0.0
    %80 = vmatprep.subr.mxu0 0.0
    %81 = vmatpush1.msra.mxu0 0.0
    %82 = vmatprep.subr.mxu0 0.0
    %83 = vmatpush1.msra.mxu0 0.0
    %84 = vmatprep.subr.mxu0 0.0
    %85 = vmatpush1.msra.mxu0 0.0
    %86 = vmatprep.subr.mxu0 0.0
    %87 = vmatpush1.msra.mxu0 0.0
    %88 = vmatprep.subr.mxu0 0.0
    %89 = vmatpush1.msra.mxu0 %v52
    %90 = vmatprep.subr.mxu0 0.0
    %91 = vmatpush1.msra.mxu0 %v51
    %92 = vmatprep.subr.mxu0 0.0
    %93 = vmatpush1.msra.mxu0 %v50
    %94 = vmatprep.subr.mxu0 0.0
    %95 = vmatpush1.msra.mxu0 %v49
    %96 = vmatprep.subr.mxu0 0.0
    %97 = vmatpush2.msra.mxu0 0.0
    %98 = vmatprep.subr.mxu0 0.0
    %99 = vmatpush2.msra.mxu0 0.0
    %100 = vmatprep.subr.mxu0 0.0
    %101 = vmatpush2.msra.mxu0 0.0
    %102 = vmatprep.subr.mxu0 0.0
    %103 = vmatpush2.msra.mxu0 0.0
    %104 = vmatprep.subr.mxu0 0.0
    %105 = vmatpush2.msra.mxu0 0.0
    %106 = vmatprep.subr.mxu0 0.0
    %107 = vmatpush2.msra.mxu0 0.0
    %108 = vmatprep.subr.mxu0 0.0
    %109 = vmatpush2.msra.mxu0 0.0
    %110 = vmatprep.subr.mxu0 0.0
    %111 = vmatpush2.msra.mxu0 0.0
    %112 = vmatprep.subr.mxu0 0.0
    %113 = vmatpush2.msra.mxu0 0.0
    %114 = vmatprep.subr.mxu0 0.0
    %115 = vmatpush2.msra.mxu0 0.0
    %116 = vmatprep.subr.mxu0 0.0
    %117 = vmatpush2.msra.mxu0 0.0
    %118 = vmatprep.subr.mxu0 0.0
    %119 = vmatpush2.msra.mxu0 0.0
    %120 = vmatprep.subr.mxu0 0.0
    %121 = vmatpush2.msra.mxu0 0.0
    %122 = vmatprep.subr.mxu0 0.0
    %123 = vmatpush2.msra.mxu0 0.0
    %124 = vmatprep.subr.mxu0 0.0
    %125 = vmatpush2.msra.mxu0 0.0
    %126 = vmatprep.subr.mxu0 0.0
    %127 = vmatpush2.msra.mxu0 0.0
    %128 = vmatprep.mubr.f32.mxu0 0.0
    %129 = vmatmul.mubr.f32.gmra.mxu0 %v62
    %v130 = vpop.f32.mrf.mxu0
    %v131 = vadd.f32 %v58, %v130
    %v132 = vpop.f32.mrf.mxu0
    %133 = vdwg.mxu0
    %v134 = vmax.f32 %v131, 0.0
    %v135 = vld [vmem:[%s3] sm:$0x1]
    %v137 = vlaneseq
    %v138 = vshrl.u32 %v137, 7
    %v139 = vsub.s32 0, %v138
    %v140 = vrot.slane %v135, %v139
    %v142 = vmul.f32 %v134, %v140
    %v143 = vsel %vm60, %v142, 0.0
    %144 = vadd.xlane.f32.xlu0 %v143
    %v145 = vpop.xlane.xlu0 %144
    %s146 = sld [smem:[#allocation2]]
    %v147 = vstv %s146
    %v148 = vadd.f32 %v145, %v147
    %149 = vxpose.xlu0.b32.start [1/16] %v148, 128
    %150 = vxpose.xlu0.b32.cont [2/16] 0.0, 128
    %151 = vxpose.xlu0.b32.cont [3/16] 0.0, 128
    %152 = vxpose.xlu0.b32.cont [4/16] 0.0, 128
    %153 = vxpose.xlu0.b32.cont [5/16] 0.0, 128
    %154 = vxpose.xlu0.b32.cont [6/16] 0.0, 128
    %155 = vxpose.xlu0.b32.cont [7/16] 0.0, 128
    %156 = vxpose.xlu0.b32.cont [8/16] 0.0, 128
    %157 = vxpose.xlu0.b32.cont [9/16] 0.0, 128
    %158 = vxpose.xlu0.b32.cont [10/16] 0.0, 128
    %159 = vxpose.xlu0.b32.cont [11/16] 0.0, 128
    %160 = vxpose.xlu0.b32.cont [12/16] 0.0, 128
    %161 = vxpose.xlu0.b32.cont [13/16] 0.0, 128
    %162 = vxpose.xlu0.b32.cont [14/16] 0.0, 128
    %163 = vxpose.xlu0.b32.cont [15/16] 0.0, 128
    %164 = vxpose.xlu0.b32.end [16/16] 0.0, 128
    %v165 = vpop.trf.xlu0
    %v166 = vpop.trf.xlu0
    %v167 = vpop.trf.xlu0
    %v168 = vpop.trf.xlu0
    %v169 = vpop.trf.xlu0
    %v170 = vpop.trf.xlu0
    %v171 = vpop.trf.xlu0
    %v172 = vpop.trf.xlu0
    %v173 = vpop.trf.xlu0
    %v174 = vpop.trf.xlu0
    %v175 = vpop.trf.xlu0
    %v176 = vpop.trf.xlu0
    %v177 = vpop.trf.xlu0
    %v178 = vpop.trf.xlu0
    %v179 = vpop.trf.xlu0
    %v180 = vpop.trf.xlu0
    %vm181 = vcmask 57344
    %182 = vst.msk [vmem:[#allocation8] sm:$0x1] %vm181, %v165
    // Predicated region
    $region30: #{tpu_custom_call.1} parent=1 // pred_check
      _
    $region31: #{tpu_custom_call.1} parent=1 // pred_check_branch
      %184 = sbr.rel (0) target = $region33
    $region32: #{tpu_custom_call.1} parent=1 // pred_region
      %s186 = ssub.s32 16, 16
      %187 = vsyncadd [#allocation5], %s186
      %s189 = sshll.u32 [#allocation8], 4
      %s190 = int_to_ptr.vmem [resolvable:$true] %s189
      %192 = dma.vmem_to_hbm [thread:$0]  %s190, 16, %s5, [#allocation5]
    $region33: #{tpu_custom_call.1} parent=1 // pred_fallthru
      _
    // Predicated region
    $region34: #{tpu_custom_call.1} parent=1 // pred_check
      _
    $region35: #{tpu_custom_call.1} parent=1 // pred_check_branch
      %194 = sbr.rel (0) target = $region37
    $region36: #{tpu_custom_call.1} parent=1 // pred_region
      %195 = dma.done [#allocation5], 16
    $region37: #{tpu_custom_call.1} parent=1 // pred_fallthru
      _
    %196 = vsyncpa [#allocation4], 1
    %197 = vsyncpa [#allocation7], 1
    %198 = vsyncpa [#allocation5], 1

</llo_original>
